<compile_context>
chip_gen: v7x
topology: tpu7x:2x2x1
jax: 0.10.0
libtpu: 0.0.40
codegen_flags: <defaults>
</compile_context>

<pallas_src>
import jax
import jax.numpy as jnp
from jax.experimental import pallas as pl
from jax.experimental.pallas import tpu as pltpu


def glu_kernel(x_ref, wa_ref, wg_ref, ba_ref, bg_ref, o_ref, acc_a, acc_g):
    # x_ref: (tm, tk); wa_ref/wg_ref: (tk, tn); ba_ref/bg_ref: (1, tn)
    # o_ref: (tm, tn); acc_a/acc_g: (tm, tn) f32 scratch
    k = pl.program_id(2)

    @pl.when(k == 0)
    def _init():
        acc_a[...] = jnp.zeros_like(acc_a)
        acc_g[...] = jnp.zeros_like(acc_g)

    x = x_ref[...]
    acc_a[...] += jnp.dot(x, wa_ref[...], preferred_element_type=jnp.float32)
    acc_g[...] += jnp.dot(x, wg_ref[...], preferred_element_type=jnp.float32)

    @pl.when(k == pl.num_programs(2) - 1)
    def _finalize():
        # f32 epilogue (no bf16 elementwise math), cast once at the end.
        a = acc_a[...] + ba_ref[...].astype(jnp.float32)
        g = acc_g[...] + bg_ref[...].astype(jnp.float32)
        o_ref[...] = (a * jax.nn.sigmoid(g)).astype(o_ref.dtype)


def _round_up(v, m):
    return (v + m - 1) // m * m


def _pad_to(arr, shape):
    if tuple(arr.shape) == tuple(shape):
        return arr
    out = jnp.zeros(shape, arr.dtype)
    return out.at[tuple(slice(0, s) for s in arr.shape)].set(arr)


def glu_layer(x, w, b, *, tm=None, tn=None, tk=None, vmem_limit_bytes=None):
    """x: (..., in_f); w: (in_f, 2*out_f); b: (2*out_f,) -> (..., out_f)."""
    in_f, two_out = w.shape
    assert two_out % 2 == 0, "weight second dim must be 2*out_features"
    out_f = two_out // 2
    lead = x.shape[:-1]
    x2 = x.reshape(-1, in_f)
    n = x2.shape[0]

    # Split weight/bias into the a / gate halves so each stays lane-dense.
    wa, wg = w[:, :out_f], w[:, out_f:]
    ba, bg = b[:out_f], b[out_f:]

    # Tile selection: lane-dim tiles are multiples of 128, row tile a multiple
    # of 8. Defaults target the 2x256x256 MXU on v6e/v7x; footprint at the
    # default (tm=512, tk=512, tn=256, f32) is ~7 MiB -> safe on all gens.
    if tn is None:
        tn = 256 if out_f > 128 else 128
    if tk is None:
        tk = 512 if in_f > 512 else _round_up(in_f, 128)
    if tm is None:
        tm = 512 if n > 512 else _round_up(n, 8)

    n_p = _round_up(n, tm)
    k_p = _round_up(in_f, tk)
    m_p = _round_up(out_f, tn)

    dtype = x.dtype
    x_p = _pad_to(x2, (n_p, k_p))
    wa_p = _pad_to(wa, (k_p, m_p))
    wg_p = _pad_to(wg, (k_p, m_p))
    ba_p = _pad_to(ba.reshape(1, out_f), (1, m_p))
    bg_p = _pad_to(bg.reshape(1, out_f), (1, m_p))

    grid = (n_p // tm, m_p // tn, k_p // tk)

    if vmem_limit_bytes is None:
        x_bytes = jnp.dtype(dtype).itemsize
        w_bytes = jnp.dtype(w.dtype).itemsize
        est = (2 * tm * tk * x_bytes          # x tile, double-buffered
               + 2 * 2 * tk * tn * w_bytes    # wa + wg tiles, double-buffered
               + 2 * tm * tn * x_bytes        # out tile, double-buffered
               + 2 * tm * tn * 4)             # f32 accumulators
        # Above defaults (16/32 MiB), below v7x physical (64 MiB).
        vmem_limit_bytes = int(min(max(2 * est, 32 * 1024 * 1024),
                                   60 * 1024 * 1024))

    out = pl.pallas_call(
        glu_kernel,
        out_shape=jax.ShapeDtypeStruct((n_p, m_p), dtype),
        grid_spec=pltpu.PrefetchScalarGridSpec(
            num_scalar_prefetch=0,
            grid=grid,
            in_specs=[
                pl.BlockSpec((tm, tk), lambda i, j, k: (i, k)),   # x
                pl.BlockSpec((tk, tn), lambda i, j, k: (k, j)),   # W_a
                pl.BlockSpec((tk, tn), lambda i, j, k: (k, j)),   # W_g
                pl.BlockSpec((1, tn), lambda i, j, k: (0, j)),    # b_a
                pl.BlockSpec((1, tn), lambda i, j, k: (0, j)),    # b_g
            ],
            out_specs=pl.BlockSpec((tm, tn), lambda i, j, k: (i, j)),
            scratch_shapes=[
                pltpu.VMEM((tm, tn), jnp.float32),   # acc for a-half
                pltpu.VMEM((tm, tn), jnp.float32),   # acc for gate-half
            ],
        ),
        compiler_params=pltpu.CompilerParams(
            dimension_semantics=("parallel", "parallel", "arbitrary"),
            vmem_limit_bytes=vmem_limit_bytes,
        ),
    )(x_p, wa_p, wg_p, ba_p, bg_p)

    return out[:n, :out_f].reshape(*lead, out_f)


def glu_layer_ref(x, w, b):
    out_f = w.shape[1] // 2
    z = x.astype(jnp.float32) @ w.astype(jnp.float32) + b.astype(jnp.float32)
    a, g = z[..., :out_f], z[..., out_f:]
    return (a * jax.nn.sigmoid(g)).astype(x.dtype)


if __name__ == "__main__":
    key = jax.random.PRNGKey(0)

    # --- Test 1: shape consistent with the module (small demo shape) ---
    in_features, out_features, batch = 32, 16, 8
    kx, kw, kb, key = jax.random.split(key, 4)
    bound = 1.0 / jnp.sqrt(in_features)
    # PyTorch weight is (2*out, in); store transposed as (in, 2*out).
    w = jax.random.uniform(kw, (in_features, 2 * out_features),
                           minval=-bound, maxval=bound, dtype=jnp.float32)
    b = jax.random.uniform(kb, (2 * out_features,),
                           minval=-bound, maxval=bound, dtype=jnp.float32)
    x = jax.random.normal(kx, (batch, in_features), dtype=jnp.float32)

    y = jax.block_until_ready(glu_layer(x, w, b))
    y_ref = glu_layer_ref(x, w, b)
    assert y.shape == (batch, out_features)
    assert jnp.allclose(y, y_ref, atol=1e-5, rtol=1e-5)

    # --- Test 2: ragged shapes + multi-step grid (padding, K reduction,
    #             out_f tiling, epilogue-on-last-k path) ---
    in_features, out_features, batch = 384, 200, 160
    kx, kw, kb, key = jax.random.split(key, 4)
    bound = 1.0 / jnp.sqrt(in_features)
    w = jax.random.uniform(kw, (in_features, 2 * out_features),
                           minval=-bound, maxval=bound, dtype=jnp.float32)
    b = jax.random.uniform(kb, (2 * out_features,),
                           minval=-bound, maxval=bound, dtype=jnp.float32)
    x = jax.random.normal(kx, (2, batch // 2, in_features), dtype=jnp.float32)

    y = jax.block_until_ready(glu_layer(x, w, b, tm=64, tn=128, tk=128))
    y_ref = glu_layer_ref(x, w, b)
    assert y.shape == (2, batch // 2, out_features)
    assert jnp.allclose(y, y_ref, atol=1e-4, rtol=1e-4)

    print("KERNEL_OK")
</pallas_src>

<mosaic_0001>
module attributes {stable_mosaic.version = 11 : i64} {
  func.func @glu_kernel(%arg0: i32, %arg1: i32, %arg2: i32, %arg3: memref<8x128xf32, #tpu.memory_space<vmem>>, %arg4: memref<128x128xf32, #tpu.memory_space<vmem>>, %arg5: memref<128x128xf32, #tpu.memory_space<vmem>>, %arg6: memref<1x128xf32, #tpu.memory_space<vmem>>, %arg7: memref<1x128xf32, #tpu.memory_space<vmem>>, %arg8: memref<8x128xf32, #tpu.memory_space<vmem>>, %arg9: memref<8x128xf32, #tpu.memory_space<vmem>>, %arg10: memref<8x128xf32, #tpu.memory_space<vmem>>) attributes {dimension_semantics = [#tpu.dimension_semantics<parallel>, #tpu.dimension_semantics<parallel>, #tpu.dimension_semantics<arbitrary>], iteration_bounds = array<i64: 1, 1, 1>, scalar_prefetch = 0 : i64, scratch_operands = 2 : i64, tpu.core_type = #tpu.core_type<tc>, window_params = [{transform_indices = @transform_0, window_bounds = array<i64: 8, 128>}, {transform_indices = @transform_1, window_bounds = array<i64: 128, 128>}, {transform_indices = @transform_2, window_bounds = array<i64: 128, 128>}, {transform_indices = @transform_3, window_bounds = array<i64: 1, 128>}, {transform_indices = @transform_4, window_bounds = array<i64: 1, 128>}, {transform_indices = @transform_5, window_bounds = array<i64: 8, 128>}]} {
    %c0_i32 = arith.constant 0 : i32
    %0 = arith.cmpi eq, %arg2, %c0_i32 : i32
    %1 = arith.extui %0 : i1 to i32
    %c0_i32_0 = arith.constant 0 : i32
    %2 = arith.cmpi ne, %1, %c0_i32_0 : i32
    scf.if %2 {
      %cst_17 = arith.constant 0.000000e+00 : f32
      %17 = vector.broadcast %cst_17 : f32 to vector<8x128xf32>
      %c0_18 = arith.constant 0 : index
      %c0_19 = arith.constant 0 : index
      %18 = vector.load %arg9[%c0_18, %c0_19] : memref<8x128xf32, #tpu.memory_space<vmem>>, vector<8x128xf32>
      tpu.vector_store %arg9[%c0_18, %c0_19], %17 {strides = array<i32>} : memref<8x128xf32, #tpu.memory_space<vmem>>, vector<8x128xf32>,
      %cst_20 = arith.constant 0.000000e+00 : f32
      %19 = vector.broadcast %cst_20 : f32 to vector<8x128xf32>
      %c0_21 = arith.constant 0 : index
      %c0_22 = arith.constant 0 : index
      %20 = vector.load %arg10[%c0_21, %c0_22] : memref<8x128xf32, #tpu.memory_space<vmem>>, vector<8x128xf32>
      tpu.vector_store %arg10[%c0_21, %c0_22], %19 {strides = array<i32>} : memref<8x128xf32, #tpu.memory_space<vmem>>, vector<8x128xf32>,
    } else {
    }
    %c0 = arith.constant 0 : index
    %c0_1 = arith.constant 0 : index
    %3 = vector.load %arg3[%c0, %c0_1] : memref<8x128xf32, #tpu.memory_space<vmem>>, vector<8x128xf32>
    %c0_2 = arith.constant 0 : index
    %c0_3 = arith.constant 0 : index
    %4 = vector.load %arg9[%c0_2, %c0_3] : memref<8x128xf32, #tpu.memory_space<vmem>>, vector<8x128xf32>
    %c0_4 = arith.constant 0 : index
    %c0_5 = arith.constant 0 : index
    %5 = vector.load %arg4[%c0_4, %c0_5] : memref<128x128xf32, #tpu.memory_space<vmem>>, vector<128x128xf32>
    %cst = arith.constant dense<0.000000e+00> : vector<8x128xf32>
    %6 = tpu.matmul %3, %5, %cst {dimension_numbers = #tpu.dot_dimension_numbers<[1], [0], [0], [1], [0, 0, 1, 1], [], []>} : vector<8x128xf32>, vector<128x128xf32>, vector<8x128xf32> -> vector<8x128xf32>
    %7 = arith.addf %4, %6 : vector<8x128xf32>
    %c0_6 = arith.constant 0 : index
    %c0_7 = arith.constant 0 : index
    %8 = vector.load %arg9[%c0_6, %c0_7] : memref<8x128xf32, #tpu.memory_space<vmem>>, vector<8x128xf32>
    tpu.vector_store %arg9[%c0_6, %c0_7], %7 {strides = array<i32>} : memref<8x128xf32, #tpu.memory_space<vmem>>, vector<8x128xf32>,
    %c0_8 = arith.constant 0 : index
    %c0_9 = arith.constant 0 : index
    %9 = vector.load %arg10[%c0_8, %c0_9] : memref<8x128xf32, #tpu.memory_space<vmem>>, vector<8x128xf32>
    %c0_10 = arith.constant 0 : index
    %c0_11 = arith.constant 0 : index
    %10 = vector.load %arg5[%c0_10, %c0_11] : memref<128x128xf32, #tpu.memory_space<vmem>>, vector<128x128xf32>
    %cst_12 = arith.constant dense<0.000000e+00> : vector<8x128xf32>
    %11 = tpu.matmul %3, %10, %cst_12 {dimension_numbers = #tpu.dot_dimension_numbers<[1], [0], [0], [1], [0, 0, 1, 1], [], []>} : vector<8x128xf32>, vector<128x128xf32>, vector<8x128xf32> -> vector<8x128xf32>
    %12 = arith.addf %9, %11 : vector<8x128xf32>
    %c0_13 = arith.constant 0 : index
    %c0_14 = arith.constant 0 : index
    %13 = vector.load %arg10[%c0_13, %c0_14] : memref<8x128xf32, #tpu.memory_space<vmem>>, vector<8x128xf32>
    tpu.vector_store %arg10[%c0_13, %c0_14], %12 {strides = array<i32>} : memref<8x128xf32, #tpu.memory_space<vmem>>, vector<8x128xf32>,
    %c0_i32_15 = arith.constant 0 : i32
    %14 = arith.cmpi eq, %arg2, %c0_i32_15 : i32
    %15 = arith.extui %14 : i1 to i32
    %c0_i32_16 = arith.constant 0 : i32
    %16 = arith.cmpi ne, %15, %c0_i32_16 : i32
    scf.if %16 {
      %c0_17 = arith.constant 0 : index
      %c0_18 = arith.constant 0 : index
      %17 = vector.load %arg9[%c0_17, %c0_18] : memref<8x128xf32, #tpu.memory_space<vmem>>, vector<8x128xf32>
      %c0_19 = arith.constant 0 : index
      %c0_20 = arith.constant 0 : index
      %18 = vector.load %arg6[%c0_19, %c0_20] : memref<1x128xf32, #tpu.memory_space<vmem>>, vector<1x128xf32>
      %19 = vector.broadcast %18 : vector<1x128xf32> to vector<8x128xf32>
      %20 = arith.addf %17, %19 : vector<8x128xf32>
      %c0_21 = arith.constant 0 : index
      %c0_22 = arith.constant 0 : index
      %21 = vector.load %arg10[%c0_21, %c0_22] : memref<8x128xf32, #tpu.memory_space<vmem>>, vector<8x128xf32>
      %c0_23 = arith.constant 0 : index
      %c0_24 = arith.constant 0 : index
      %22 = vector.load %arg7[%c0_23, %c0_24] : memref<1x128xf32, #tpu.memory_space<vmem>>, vector<1x128xf32>
      %23 = vector.broadcast %22 : vector<1x128xf32> to vector<8x128xf32>
      %24 = arith.addf %21, %23 : vector<8x128xf32>
      %25 = arith.negf %24 : vector<8x128xf32>
      %26 = math.exp %25 : vector<8x128xf32>
      %cst_25 = arith.constant 1.000000e+00 : f32
      %27 = vector.broadcast %cst_25 : f32 to vector<8x128xf32>
      %28 = arith.addf %27, %26 : vector<8x128xf32>
      %29 = arith.divf %27, %28 : vector<8x128xf32>
      %30 = arith.mulf %20, %29 : vector<8x128xf32>
      %c0_26 = arith.constant 0 : index
      %c0_27 = arith.constant 0 : index
      %31 = vector.load %arg8[%c0_26, %c0_27] : memref<8x128xf32, #tpu.memory_space<vmem>>, vector<8x128xf32>
      tpu.vector_store %arg8[%c0_26, %c0_27], %30 {strides = array<i32>} : memref<8x128xf32, #tpu.memory_space<vmem>>, vector<8x128xf32>,
    } else {
    }
    return
  }
  func.func @transform_0(%arg0: i32, %arg1: i32, %arg2: i32) -> (i32, i32) {
    %c0_i32 = arith.constant 0 : i32
    return %arg0, %arg2 : i32, i32
  }
  func.func @transform_1(%arg0: i32, %arg1: i32, %arg2: i32) -> (i32, i32) {
    %c0_i32 = arith.constant 0 : i32
    return %arg2, %arg1 : i32, i32
  }
  func.func @transform_2(%arg0: i32, %arg1: i32, %arg2: i32) -> (i32, i32) {
    %c0_i32 = arith.constant 0 : i32
    return %arg2, %arg1 : i32, i32
  }
  func.func @transform_3(%arg0: i32, %arg1: i32, %arg2: i32) -> (i32, i32) {
    %c0_i32 = arith.constant 0 : i32
    %c0_i32_0 = arith.constant 0 : i32
    return %c0_i32, %arg1 : i32, i32
  }
  func.func @transform_4(%arg0: i32, %arg1: i32, %arg2: i32) -> (i32, i32) {
    %c0_i32 = arith.constant 0 : i32
    %c0_i32_0 = arith.constant 0 : i32
    return %c0_i32, %arg1 : i32, i32
  }
  func.func @transform_5(%arg0: i32, %arg1: i32, %arg2: i32) -> (i32, i32) {
    %c0_i32 = arith.constant 0 : i32
    return %arg0, %arg1 : i32, i32
  }
}

</mosaic_0001>

<llo_original>
// kernel: tpu_custom_call.1
$region0: #{tpu_custom_call.1}
  #allocation0 [shape = 'u32[]', space=smem, size = 0x4, offset = 0x4, fixed_abs, tag = 'smem constant byte address 0x4 - core index']
  #allocation1 [shape = 'u32[144,128]{1,0:T(1,128)}', space=vmem, size = 0x12000, scoped, tag = 'internal scratch']
  #allocation2 [shape = 'f32[8,128]{1,0:T(8,128)}', space=vmem, size = 0x1000, scoped, tag = 'scratch operand']
  #allocation3 [shape = 'f32[8,128]{1,0:T(8,128)}', space=vmem, size = 0x1000, scoped, tag = 'scratch operand']
  %s0 = inlined_call_operand.hbm [shape: f32[8,128], index: 0, kind: input, shape index: {}]
  %s1 = inlined_call_operand.hbm [shape: f32[128,128], index: 1, kind: input, shape index: {}]
  %s2 = inlined_call_operand.hbm [shape: f32[128,128], index: 2, kind: input, shape index: {}]
  %s3 = inlined_call_operand.vmem [shape: f32[1,128], index: 3, kind: input, shape index: {}]
  %s4 = inlined_call_operand.vmem [shape: f32[1,128], index: 4, kind: input, shape index: {}]
  %s5 = inlined_call_operand.hbm [shape: f32[8,128], index: 5, kind: output, shape index: {}]
  %s6 = sld [smem:[#allocation0]]
  $region50: #{tpu_custom_call.1} parent=0
    _
  %s8 = ssub.s32 1, %s6
  %s9 = scalar_select 0, %s8, %s6
  $region1: #{tpu_custom_call.1} parent=0
    #allocation4 [shape = 'u8[4096]{0}', space=vmem, size = 0x1000, scoped, tag = 'input window, operand 0, single buffered']
    #allocation5 [shape = 's32[1]{0}', space=sflag, size = 0x4, scoped, tag = 'scoped memory for tpu_custom_call.1']
    #allocation6 [shape = 's32[1]{0}', space=sflag, size = 0x4, scoped, tag = 'scoped memory for tpu_custom_call.1']
    #allocation7 [shape = 'u8[65536]{0}', space=vmem, size = 0x10000, scoped, tag = 'input window, operand 1, single buffered']
    #allocation8 [shape = 's32[1]{0}', space=sflag, size = 0x4, scoped, tag = 'scoped memory for tpu_custom_call.1']
    #allocation9 [shape = 'u8[65536]{0}', space=vmem, size = 0x10000, scoped, tag = 'input window, operand 2, single buffered']
    #allocation10 [shape = 'u8[4096]{0}', space=vmem, size = 0x1000, scoped, tag = 'output window, operand 0, single buffered']
    %10 = vsyncpa [#allocation5], 0
    %11 = vsyncpa [#allocation8], 0
    %12 = vsyncpa [#allocation6], 0
    // Predicated region
    $region2: #{tpu_custom_call.1} parent=1 // pred_check
      _
    $region3: #{tpu_custom_call.1} parent=1 // pred_check_branch
      %14 = sbr.rel (0) target = $region5
    $region4: #{tpu_custom_call.1} parent=1 // pred_region
      %s16 = ssub.s32 128, 128
      %17 = vsyncadd [#allocation5], %s16
      %s19 = sshll.u32 [#allocation4], 4
      %s20 = int_to_ptr.vmem [resolvable:$true] %s19
      %22 = dma.hbm_to_vmem [thread:$0]  %s0, 128, %s20, [#allocation5]
    $region5: #{tpu_custom_call.1} parent=1 // pred_fallthru
      _
    // Predicated region
    $region6: #{tpu_custom_call.1} parent=1 // pred_check
      _
    $region7: #{tpu_custom_call.1} parent=1 // pred_check_branch
      %24 = sbr.rel (0) target = $region9
    $region8: #{tpu_custom_call.1} parent=1 // pred_region
      %s26 = ssub.s32 2048, 2048
      %27 = vsyncadd [#allocation8], %s26
      %s28 = sshll.u32 [#allocation7], 4
      %s29 = int_to_ptr.vmem [resolvable:$true] %s28
      %34 = dma.hbm_to_vmem [thread:$0]  %s1, 2048, %s29, [#allocation8], 128, 128, 8
    $region9: #{tpu_custom_call.1} parent=1 // pred_fallthru
      _
    // Predicated region
    $region10: #{tpu_custom_call.1} parent=1 // pred_check
      _
    $region11: #{tpu_custom_call.1} parent=1 // pred_check_branch
      %36 = sbr.rel (0) target = $region13
    $region12: #{tpu_custom_call.1} parent=1 // pred_region
      %s38 = ssub.s32 2048, 2048
      %39 = vsyncadd [#allocation8], %s38
      %s40 = sshll.u32 [#allocation9], 4
      %s41 = int_to_ptr.vmem [resolvable:$true] %s40
      %46 = dma.hbm_to_vmem [thread:$0]  %s2, 2048, %s41, [#allocation8], 128, 128, 8
    $region13: #{tpu_custom_call.1} parent=1 // pred_fallthru
      _
    // Predicated region
    $region14: #{tpu_custom_call.1} parent=1 // pred_check
      _
    $region15: #{tpu_custom_call.1} parent=1 // pred_check_branch
      %48 = sbr.rel (0) target = $region17
    $region16: #{tpu_custom_call.1} parent=1 // pred_region
      _
    $region17: #{tpu_custom_call.1} parent=1 // pred_fallthru
      _
    // Predicated region
    $region18: #{tpu_custom_call.1} parent=1 // pred_check
      _
    $region19: #{tpu_custom_call.1} parent=1 // pred_check_branch
      %50 = sbr.rel (0) target = $region21
    $region20: #{tpu_custom_call.1} parent=1 // pred_region
      _
    $region21: #{tpu_custom_call.1} parent=1 // pred_fallthru
      _
    // Predicated region
    $region22: #{tpu_custom_call.1} parent=1 // pred_check
      _
    $region23: #{tpu_custom_call.1} parent=1 // pred_check_branch
      %52 = sbr.rel (0) target = $region25
    $region24: #{tpu_custom_call.1} parent=1 // pred_region
      %53 = dma.done [#allocation5], 128
    $region25: #{tpu_custom_call.1} parent=1 // pred_fallthru
      _
    // Predicated region
    $region26: #{tpu_custom_call.1} parent=1 // pred_check
      _
    $region27: #{tpu_custom_call.1} parent=1 // pred_check_branch
      %55 = sbr.rel (0) target = $region29
    $region28: #{tpu_custom_call.1} parent=1 // pred_region
      %56 = dma.done [#allocation8], 2048
    $region29: #{tpu_custom_call.1} parent=1 // pred_fallthru
      _
    // Predicated region
    $region30: #{tpu_custom_call.1} parent=1 // pred_check
      _
    $region31: #{tpu_custom_call.1} parent=1 // pred_check_branch
      %58 = sbr.rel (0) target = $region33
    $region32: #{tpu_custom_call.1} parent=1 // pred_region
      %59 = dma.done [#allocation8], 2048
    $region33: #{tpu_custom_call.1} parent=1 // pred_fallthru
      _
    %p60 = scmp.eq.s32.totalorder 0, 0
    // Predicated region
    $region34: #{tpu_custom_call.1} parent=1 // pred_check
      %p61 = pneg %p60
    $region35: #{tpu_custom_call.1} parent=1 // pred_check_branch
      %63 = sbr.rel (%p61) target = $region37
    $region36: #{tpu_custom_call.1} parent=1 // pred_region
      %64 = vst [vmem:[#allocation2] sm:$0xff] 0.0
      %65 = vst [vmem:[#allocation3] sm:$0xff] 0.0
    $region37: #{tpu_custom_call.1} parent=1 // pred_fallthru
      _
    %v66 = vld [vmem:[#allocation4] sm:$0xff]
    %v67 = vld [vmem:[#allocation2] sm:$0xff]
    %v68 = vld [vmem:[#allocation7] sm:$0xff]
    %v69 = vld [vmem:[#allocation7 + $0x8] sm:$0xff]
    %v70 = vld [vmem:[#allocation7 + $0x10] sm:$0xff]
    %v71 = vld [vmem:[#allocation7 + $0x18] sm:$0xff]
    %v72 = vld [vmem:[#allocation7 + $0x20] sm:$0xff]
    %v73 = vld [vmem:[#allocation7 + $0x28] sm:$0xff]
    %v74 = vld [vmem:[#allocation7 + $0x30] sm:$0xff]
    %v75 = vld [vmem:[#allocation7 + $0x38] sm:$0xff]
    %v76 = vld [vmem:[#allocation7 + $0x40] sm:$0xff]
    %v77 = vld [vmem:[#allocation7 + $0x48] sm:$0xff]
    %v78 = vld [vmem:[#allocation7 + $0x50] sm:$0xff]
    %v79 = vld [vmem:[#allocation7 + $0x58] sm:$0xff]
    %v80 = vld [vmem:[#allocation7 + $0x60] sm:$0xff]
    %v81 = vld [vmem:[#allocation7 + $0x68] sm:$0xff]
    %v82 = vld [vmem:[#allocation7 + $0x70] sm:$0xff]
    %v83 = vld [vmem:[#allocation7 + $0x78] sm:$0xff]
    %84 = vmatprep.subr.mxu0 0.0
    %85 = vmatpush1.msra.mxu0 %v68
    %86 = vmatprep.subr.mxu0 0.0
    %87 = vmatpush1.msra.mxu0 %v69
    %88 = vmatprep.subr.mxu0 0.0
    %89 = vmatpush1.msra.mxu0 %v70
    %90 = vmatprep.subr.mxu0 0.0
    %91 = vmatpush1.msra.mxu0 %v71
    %92 = vmatprep.subr.mxu0 0.0
    %93 = vmatpush1.msra.mxu0 %v72
    %94 = vmatprep.subr.mxu0 0.0
    %95 = vmatpush1.msra.mxu0 %v73
    %96 = vmatprep.subr.mxu0 0.0
    %97 = vmatpush1.msra.mxu0 %v74
    %98 = vmatprep.subr.mxu0 0.0
    %99 = vmatpush1.msra.mxu0 %v75
    %100 = vmatprep.subr.mxu0 0.0
    %101 = vmatpush1.msra.mxu0 %v76
    %102 = vmatprep.subr.mxu0 0.0
    %103 = vmatpush1.msra.mxu0 %v77
    %104 = vmatprep.subr.mxu0 0.0
    %105 = vmatpush1.msra.mxu0 %v78
    %106 = vmatprep.subr.mxu0 0.0
    %107 = vmatpush1.msra.mxu0 %v79
    %108 = vmatprep.subr.mxu0 0.0
    %109 = vmatpush1.msra.mxu0 %v80
    %110 = vmatprep.subr.mxu0 0.0
    %111 = vmatpush1.msra.mxu0 %v81
    %112 = vmatprep.subr.mxu0 0.0
    %113 = vmatpush1.msra.mxu0 %v82
    %114 = vmatprep.subr.mxu0 0.0
    %115 = vmatpush1.msra.mxu0 %v83
    %116 = vmatprep.subr.mxu0 0.0
    %117 = vmatpush1.msra.mxu0 0.0
    %118 = vmatprep.subr.mxu0 0.0
    %119 = vmatpush1.msra.mxu0 0.0
    %120 = vmatprep.subr.mxu0 0.0
    %121 = vmatpush1.msra.mxu0 0.0
    %122 = vmatprep.subr.mxu0 0.0
    %123 = vmatpush1.msra.mxu0 0.0
    %124 = vmatprep.subr.mxu0 0.0
    %125 = vmatpush1.msra.mxu0 0.0
    %126 = vmatprep.subr.mxu0 0.0
    %127 = vmatpush1.msra.mxu0 0.0
    %128 = vmatprep.subr.mxu0 0.0
    %129 = vmatpush1.msra.mxu0 0.0
    %130 = vmatprep.subr.mxu0 0.0
    %131 = vmatpush1.msra.mxu0 0.0
    %132 = vmatprep.subr.mxu0 0.0
    %133 = vmatpush1.msra.mxu0 0.0
    %134 = vmatprep.subr.mxu0 0.0
    %135 = vmatpush1.msra.mxu0 0.0
    %136 = vmatprep.subr.mxu0 0.0
    %137 = vmatpush1.msra.mxu0 0.0
    %138 = vmatprep.subr.mxu0 0.0
    %139 = vmatpush1.msra.mxu0 0.0
    %140 = vmatprep.subr.mxu0 0.0
    %141 = vmatpush1.msra.mxu0 0.0
    %142 = vmatprep.subr.mxu0 0.0
    %143 = vmatpush1.msra.mxu0 0.0
    %144 = vmatprep.subr.mxu0 0.0
    %145 = vmatpush1.msra.mxu0 0.0
    %146 = vmatprep.subr.mxu0 0.0
    %147 = vmatpush1.msra.mxu0 0.0
    %148 = vmatprep.mubr.f32.mxu0 0.0
    %149 = vmatmul.mubr.f32.gmra.mrb[0].mxu0 %v66
    %v150 = vpop.f32.mrb[0].mxu0
    %v151 = vadd.f32 0.0, %v150
    %v152 = vpop.f32.mrb[0].mxu0
    %153 = vdwg.mxu0
    %v154 = vadd.f32 %v67, %v151
    %155 = vst [vmem:[#allocation2] sm:$0xff] %v154
    %v156 = vld [vmem:[#allocation3] sm:$0xff]
    %v157 = vld [vmem:[#allocation9] sm:$0xff]
    %v158 = vld [vmem:[#allocation9 + $0x8] sm:$0xff]
    %v159 = vld [vmem:[#allocation9 + $0x10] sm:$0xff]
    %v160 = vld [vmem:[#allocation9 + $0x18] sm:$0xff]
    %v161 = vld [vmem:[#allocation9 + $0x20] sm:$0xff]
    %v162 = vld [vmem:[#allocation9 + $0x28] sm:$0xff]
    %v163 = vld [vmem:[#allocation9 + $0x30] sm:$0xff]
    %v164 = vld [vmem:[#allocation9 + $0x38] sm:$0xff]
    %v165 = vld [vmem:[#allocation9 + $0x40] sm:$0xff]
    %v166 = vld [vmem:[#allocation9 + $0x48] sm:$0xff]
    %v167 = vld [vmem:[#allocation9 + $0x50] sm:$0xff]
    %v168 = vld [vmem:[#allocation9 + $0x58] sm:$0xff]
    %v169 = vld [vmem:[#allocation9 + $0x60] sm:$0xff]
    %v170 = vld [vmem:[#allocation9 + $0x68] sm:$0xff]
    %v171 = vld [vmem:[#allocation9 + $0x70] sm:$0xff]
    %v172 = vld [vmem:[#allocation9 + $0x78] sm:$0xff]
    %173 = vmatprep.subr.mxu0 0.0
    %174 = vmatpush1.msra.mxu0 %v157
    %175 = vmatprep.subr.mxu0 0.0
    %176 = vmatpush1.msra.mxu0 %v158
    %177 = vmatprep.subr.mxu0 0.0
    %178 = vmatpush1.msra.mxu0 %v159
    %179 = vmatprep.subr.mxu0 0.0
    %180 = vmatpush1.msra.mxu0 %v160
    %181 = vmatprep.subr.mxu0 0.0
    %182 = vmatpush1.msra.mxu0 %v161
    %183 = vmatprep.subr.mxu0 0.0
    %184 = vmatpush1.msra.mxu0 %v162
    %185 = vmatprep.subr.mxu0 0.0
    %186 = vmatpush1.msra.mxu0 %v163
    %187 = vmatprep.subr.mxu0 0.0
    %188 = vmatpush1.msra.mxu0 %v164
    %189 = vmatprep.subr.mxu0 0.0
    %190 = vmatpush1.msra.mxu0 %v165
    %191 = vmatprep.subr.mxu0 0.0
    %192 = vmatpush1.msra.mxu0 %v166
    %193 = vmatprep.subr.mxu0 0.0
    %194 = vmatpush1.msra.mxu0 %v167
    %195 = vmatprep.subr.mxu0 0.0
    %196 = vmatpush1.msra.mxu0 %v168
    %197 = vmatprep.subr.mxu0 0.0
    %198 = vmatpush1.msra.mxu0 %v169
    %199 = vmatprep.subr.mxu0 0.0
    %200 = vmatpush1.msra.mxu0 %v170
    %201 = vmatprep.subr.mxu0 0.0
    %202 = vmatpush1.msra.mxu0 %v171
    %203 = vmatprep.subr.mxu0 0.0
    %204 = vmatpush1.msra.mxu0 %v172
    %205 = vmatprep.subr.mxu0 0.0
    %206 = vmatpush1.msra.mxu0 0.0
    %207 = vmatprep.subr.mxu0 0.0
    %208 = vmatpush1.msra.mxu0 0.0
    %209 = vmatprep.subr.mxu0 0.0
    %210 = vmatpush1.msra.mxu0 0.0
    %211 = vmatprep.subr.mxu0 0.0
    %212 = vmatpush1.msra.mxu0 0.0
    %213 = vmatprep.subr.mxu0 0.0
    %214 = vmatpush1.msra.mxu0 0.0
    %215 = vmatprep.subr.mxu0 0.0
    %216 = vmatpush1.msra.mxu0 0.0
    %217 = vmatprep.subr.mxu0 0.0
    %218 = vmatpush1.msra.mxu0 0.0
    %219 = vmatprep.subr.mxu0 0.0
    %220 = vmatpush1.msra.mxu0 0.0
    %221 = vmatprep.subr.mxu0 0.0
    %222 = vmatpush1.msra.mxu0 0.0
    %223 = vmatprep.subr.mxu0 0.0
    %224 = vmatpush1.msra.mxu0 0.0
    %225 = vmatprep.subr.mxu0 0.0
    %226 = vmatpush1.msra.mxu0 0.0
    %227 = vmatprep.subr.mxu0 0.0
    %228 = vmatpush1.msra.mxu0 0.0
    %229 = vmatprep.subr.mxu0 0.0
    %230 = vmatpush1.msra.mxu0 0.0
    %231 = vmatprep.subr.mxu0 0.0
    %232 = vmatpush1.msra.mxu0 0.0
    %233 = vmatprep.subr.mxu0 0.0
    %234 = vmatpush1.msra.mxu0 0.0
    %235 = vmatprep.subr.mxu0 0.0
    %236 = vmatpush1.msra.mxu0 0.0
    %237 = vmatprep.mubr.f32.mxu0 0.0
    %238 = vmatmul.mubr.f32.gmra.mrb[0].mxu0 %v66
    %v239 = vpop.f32.mrb[0].mxu0
    %v240 = vadd.f32 0.0, %v239
    %v241 = vpop.f32.mrb[0].mxu0
    %242 = vdwg.mxu0
    %v243 = vadd.f32 %v156, %v240
    %244 = vst [vmem:[#allocation3] sm:$0xff] %v243
    // Predicated region
    $region38: #{tpu_custom_call.1} parent=1 // pred_check
      %p245 = pneg %p60
    $region39: #{tpu_custom_call.1} parent=1 // pred_check_branch
      %247 = sbr.rel (%p245) target = $region41
    $region40: #{tpu_custom_call.1} parent=1 // pred_region
      %v248 = vld [vmem:[#allocation2] sm:$0xff]
      %v249 = vld [vmem:[%s3] sm:$0x1]
      %v251 = vlaneseq
      %v252 = vshrl.u32 %v251, 7
      %v253 = vsub.s32 0, %v252
      %v254 = vrot.slane %v249, %v253
      %v256 = vadd.f32 %v248, %v254
      %v257 = vld [vmem:[#allocation3] sm:$0xff]
      %v258 = vld [vmem:[%s4] sm:$0x1]
      %v260 = vlaneseq
      %v261 = vshrl.u32 %v260, 7
      %v262 = vsub.s32 0, %v261
      %v263 = vrot.slane %v258, %v262
      %v265 = vadd.f32 %v257, %v263
      %v266 = vxor.u32 %v265, 2147483648
      %v267 = vmul.f32 %v266, 1.442695
      %v268 = vpow.pop %v267
      %v269 = vadd.f32 %v268, 1.0
      %v270 = vrcp.pop %v269
      %v271 = vmul.f32 1.0, %v270
      %v272 = vmul.f32 %v256, %v271
      %273 = vst [vmem:[#allocation10] sm:$0xff] %v272
    $region41: #{tpu_custom_call.1} parent=1 // pred_fallthru
      _
    // Predicated region
    $region42: #{tpu_custom_call.1} parent=1 // pred_check
      _
    $region43: #{tpu_custom_call.1} parent=1 // pred_check_branch
      %275 = sbr.rel (0) target = $region45
    $region44: #{tpu_custom_call.1} parent=1 // pred_region
      %s277 = ssub.s32 128, 128
      %278 = vsyncadd [#allocation6], %s277
      %s280 = sshll.u32 [#allocation10], 4
      %s281 = int_to_ptr.vmem [resolvable:$true] %s280
      %283 = dma.vmem_to_hbm [thread:$0]  %s281, 128, %s5, [#allocation6]
    $region45: #{tpu_custom_call.1} parent=1 // pred_fallthru
      _
    // Predicated region
    $region46: #{tpu_custom_call.1} parent=1 // pred_check
      _
    $region47: #{tpu_custom_call.1} parent=1 // pred_check_branch
      %285 = sbr.rel (0) target = $region49
    $region48: #{tpu_custom_call.1} parent=1 // pred_region
      %286 = dma.done [#allocation6], 128
    $region49: #{tpu_custom_call.1} parent=1 // pred_fallthru
      _
    %287 = vsyncpa [#allocation5], 1
    %288 = vsyncpa [#allocation8], 1
    %289 = vsyncpa [#allocation6], 1

</llo_original>
